<compile_context>
chip_gen: v7x
topology: tpu7x:2x2x1
jax: 0.10.0
libtpu: 0.0.40
codegen_flags: <defaults>
</compile_context>

<pallas_src>
import jax
import jax.numpy as jnp
from jax.experimental import pallas as pl
from jax.experimental.pallas import tpu as pltpu


def gtconv_kernel(filt_ref, a_ref, o_ref):
    """filt_ref: (O, I) f32 softmaxed filter in SMEM (read as scalars).
    a_ref:  (I, TR, 128) lane-dense tile of the flattened adjacency stack.
    o_ref:  (O, TR, 128) output tile."""
    in_c = a_ref.shape[0]
    out_c = o_ref.shape[0]
    # Load each input-channel tile once (single load op per channel in the
    # jaxpr, shared by every output channel), then fan out with scalar
    # broadcast multiply-adds on the VPU; one store per output channel.
    a_vals = [a_ref[i].astype(jnp.float32) for i in range(in_c)]
    for o in range(out_c):
        acc = filt_ref[o, 0] * a_vals[0]
        for i in range(1, in_c):
            acc = acc + filt_ref[o, i] * a_vals[i]
        o_ref[o] = acc.astype(o_ref.dtype)


def _tpu_policy():
    """Per-generation VMEM budget / core-count policy (conservative fallback)."""
    vmem_cap = None
    try:
        vmem_cap = int(getattr(pltpu.get_tpu_info(), "vmem_capacity_bytes", 0)) or None
    except Exception:
        vmem_cap = None
    if vmem_cap is None:
        vmem_cap = 64 * 1024 * 1024  # assume the smallest (v7x-class) VMEM
    if vmem_cap <= 64 * 1024 * 1024:
        # v7x-class: 64 MiB per TensorCore, 2 TensorCores per chip.
        return {"num_cores": 2,
                "target_bytes": 16 * 1024 * 1024,
                "limit_bytes": 40 * 1024 * 1024}
    # v5e / v6e: single TensorCore, 128 MiB physical VMEM.
    return {"num_cores": 1,
            "target_bytes": 24 * 1024 * 1024,
            "limit_bytes": 64 * 1024 * 1024}


def _choose_tile_rows(r_rows, in_c, out_c, target_bytes, num_cores):
    """Rows (each 128 lanes wide, f32) per block so that the double-buffered
    in+out blocks fit under target_bytes.  Single-TC chips get the biggest
    tile / fewest steps; 2-TC chips get an even step count >= 4 when there is
    enough work so both cores stay balanced with a pipelined double buffer."""
    per_row = 2 * (in_c + out_c) * 128 * 4          # double-buffered, f32, padded
    tr = max(8, (target_bytes // per_row) // 8 * 8)  # sublane multiple
    tr = min(tr, r_rows)

    if num_cores > 1 and r_rows >= 32:
        cap = max(8, (r_rows // 4) // 8 * 8)         # >= 4 steps (2 per core)
        tr = min(tr, cap)
        steps = -(-r_rows // tr)
        while steps % 2 == 1 and tr > 8:             # prefer an even split
            tr -= 8
            steps = -(-r_rows // tr)
    return int(tr)


def gtconv_forward(weight, a_dense):
    """weight:  (out_channels, in_channels) f32 (pre-softmax, as in the module).
    a_dense: (in_channels, N, N) f32 dense stack of adjacency matrices.
    returns: (out_channels, N, N) f32 weighted combinations."""
    out_c, in_c = weight.shape
    ic2, n, n2 = a_dense.shape
    assert ic2 == in_c and n == n2

    # Softmax hoisted out of the kernel: computed once in the wrapper.
    filt = jax.nn.softmax(weight.astype(jnp.float32), axis=1)

    # Lane-dense layout: flatten (N, N), pad the flat axis to a multiple of
    # 128 and view it as (rows, 128).  No pad is materialized when N*N is
    # already a multiple of 128 (e.g. any power-of-two N).
    f = n * n
    fp = ((f + 127) // 128) * 128
    a_flat = a_dense.astype(jnp.float32).reshape(in_c, f)
    if fp != f:
        a_flat = jnp.pad(a_flat, ((0, 0), (0, fp - f)))
    r_rows = fp // 128
    a3 = a_flat.reshape(in_c, r_rows, 128)

    policy = _tpu_policy()
    total_bytes = (in_c + out_c) * fp * 4
    if total_bytes <= 2 * 1024 * 1024:
        tile_rows = r_rows          # tiny problem: one step, zero split overhead
    else:
        tile_rows = _choose_tile_rows(r_rows, in_c, out_c,
                                      policy["target_bytes"], policy["num_cores"])
    grid = (pl.cdiv(r_rows, tile_rows),)

    cost = pl.CostEstimate(
        flops=2 * out_c * in_c * f,
        transcendentals=0,
        bytes_accessed=4 * (in_c + out_c) * fp,
    )

    out3 = pl.pallas_call(
        gtconv_kernel,
        out_shape=jax.ShapeDtypeStruct((out_c, r_rows, 128), jnp.float32),
        grid_spec=pltpu.PrefetchScalarGridSpec(
            num_scalar_prefetch=0,
            grid=grid,
            in_specs=[
                # whole (tiny) softmaxed filter in SMEM, read as scalars
                pl.BlockSpec(memory_space=pltpu.MemorySpace.SMEM),
                # lane-dense row tile of the flattened adjacency stack
                pl.BlockSpec((in_c, tile_rows, 128), lambda r: (0, r, 0)),
            ],
            out_specs=pl.BlockSpec((out_c, tile_rows, 128), lambda r: (0, r, 0)),
        ),
        compiler_params=pltpu.CompilerParams(
            dimension_semantics=("parallel",),
            vmem_limit_bytes=policy["limit_bytes"],
        ),
        cost_estimate=cost,
    )(filt, a3)

    # Drop the lane padding and restore the (O, N, N) view.
    return out3.reshape(out_c, fp)[:, :f].reshape(out_c, n, n)


def gtconv_reference(weight, a_dense):
    filt = jax.nn.softmax(weight, axis=1)
    return jnp.einsum("oi,inm->onm", filt, a_dense)


if __name__ == "__main__":
    in_channels = 4    # number of edge types / adjacency matrices in A
    out_channels = 2

    key = jax.random.PRNGKey(0)

    # num_nodes=16: N*N already a multiple of 128 (no pad), single-step grid.
    # num_nodes=20: exercises the lane-pad (400 -> 512) + slice-back path.
    # num_nodes=384: exercises the multi-step tiled path on 2-TC chips.
    for num_nodes in (16, 20, 384):
        k_w, k_a, k_m, key = jax.random.split(key, 4)

        # nn.init.normal_(weight, 0.01) -> mean=0.01, std=1.0
        weight = 0.01 + jax.random.normal(
            k_w, (out_channels, in_channels), dtype=jnp.float32)

        # Dense stack of sparse-ish adjacency matrices (~70% zeros): the dense
        # equivalent of the module's COO (edge_index, edge_value) list.
        vals = jax.random.uniform(
            k_a, (in_channels, num_nodes, num_nodes), dtype=jnp.float32)
        mask = jax.random.uniform(
            k_m, (in_channels, num_nodes, num_nodes)) < 0.3
        a_dense = jnp.where(mask, vals, 0.0).astype(jnp.float32)

        out = jax.block_until_ready(gtconv_forward(weight, a_dense))
        ref = gtconv_reference(weight, a_dense)
        assert out.shape == (out_channels, num_nodes, num_nodes)
        assert jnp.allclose(out, ref, atol=1e-5, rtol=1e-5)

    print("KERNEL_OK")
</pallas_src>

<mosaic_0001>
module attributes {stable_mosaic.version = 11 : i64} {
  func.func @gtconv_kernel(%arg0: i32, %arg1: memref<2x4xf32, #tpu.memory_space<smem>>, %arg2: memref<4x2x128xf32, #tpu.memory_space<vmem>>, %arg3: memref<2x2x128xf32, #tpu.memory_space<vmem>>) attributes {dimension_semantics = [#tpu.dimension_semantics<parallel>], iteration_bounds = array<i64: 1>, scalar_prefetch = 0 : i64, scratch_operands = 0 : i64, tpu.core_type = #tpu.core_type<tc>, window_params = [{transform_indices = @transform_0, window_bounds = array<i64: 2, 4>}, {transform_indices = @transform_1, window_bounds = array<i64: 4, 2, 128>}, {transform_indices = @transform_2, window_bounds = array<i64: 2, 2, 128>}]} {
    %c0 = arith.constant 0 : index
    %c0_0 = arith.constant 0 : index
    %c0_1 = arith.constant 0 : index
    %0 = vector.load %arg2[%c0, %c0_0, %c0_1] : memref<4x2x128xf32, #tpu.memory_space<vmem>>, vector<1x2x128xf32>
    %1 = vector.shape_cast %0 : vector<1x2x128xf32> to vector<2x128xf32>
    %c1 = arith.constant 1 : index
    %c0_2 = arith.constant 0 : index
    %c0_3 = arith.constant 0 : index
    %2 = vector.load %arg2[%c1, %c0_2, %c0_3] : memref<4x2x128xf32, #tpu.memory_space<vmem>>, vector<1x2x128xf32>
    %3 = vector.shape_cast %2 : vector<1x2x128xf32> to vector<2x128xf32>
    %c2 = arith.constant 2 : index
    %c0_4 = arith.constant 0 : index
    %c0_5 = arith.constant 0 : index
    %4 = vector.load %arg2[%c2, %c0_4, %c0_5] : memref<4x2x128xf32, #tpu.memory_space<vmem>>, vector<1x2x128xf32>
    %5 = vector.shape_cast %4 : vector<1x2x128xf32> to vector<2x128xf32>
    %c3 = arith.constant 3 : index
    %c0_6 = arith.constant 0 : index
    %c0_7 = arith.constant 0 : index
    %6 = vector.load %arg2[%c3, %c0_6, %c0_7] : memref<4x2x128xf32, #tpu.memory_space<vmem>>, vector<1x2x128xf32>
    %7 = vector.shape_cast %6 : vector<1x2x128xf32> to vector<2x128xf32>
    %c0_8 = arith.constant 0 : index
    %c0_9 = arith.constant 0 : index
    %8 = memref.load %arg1[%c0_8, %c0_9] : memref<2x4xf32, #tpu.memory_space<smem>>
    %9 = vector.broadcast %8 : f32 to vector<2x128xf32>
    %10 = arith.mulf %9, %1 : vector<2x128xf32>
    %c0_10 = arith.constant 0 : index
    %c1_11 = arith.constant 1 : index
    %11 = memref.load %arg1[%c0_10, %c1_11] : memref<2x4xf32, #tpu.memory_space<smem>>
    %12 = vector.broadcast %11 : f32 to vector<2x128xf32>
    %13 = arith.mulf %12, %3 : vector<2x128xf32>
    %14 = arith.addf %10, %13 : vector<2x128xf32>
    %c0_12 = arith.constant 0 : index
    %c2_13 = arith.constant 2 : index
    %15 = memref.load %arg1[%c0_12, %c2_13] : memref<2x4xf32, #tpu.memory_space<smem>>
    %16 = vector.broadcast %15 : f32 to vector<2x128xf32>
    %17 = arith.mulf %16, %5 : vector<2x128xf32>
    %18 = arith.addf %14, %17 : vector<2x128xf32>
    %c0_14 = arith.constant 0 : index
    %c3_15 = arith.constant 3 : index
    %19 = memref.load %arg1[%c0_14, %c3_15] : memref<2x4xf32, #tpu.memory_space<smem>>
    %20 = vector.broadcast %19 : f32 to vector<2x128xf32>
    %21 = arith.mulf %20, %7 : vector<2x128xf32>
    %22 = arith.addf %18, %21 : vector<2x128xf32>
    %c0_16 = arith.constant 0 : index
    %c0_17 = arith.constant 0 : index
    %c0_18 = arith.constant 0 : index
    %23 = vector.load %arg3[%c0_16, %c0_17, %c0_18] : memref<2x2x128xf32, #tpu.memory_space<vmem>>, vector<1x2x128xf32>
    %24 = vector.shape_cast %23 : vector<1x2x128xf32> to vector<2x128xf32>
    %25 = vector.shape_cast %22 : vector<2x128xf32> to vector<1x2x128xf32>
    tpu.vector_store %arg3[%c0_16, %c0_17, %c0_18], %25 {strides = array<i32>} : memref<2x2x128xf32, #tpu.memory_space<vmem>>, vector<1x2x128xf32>,
    %c1_19 = arith.constant 1 : index
    %c0_20 = arith.constant 0 : index
    %26 = memref.load %arg1[%c1_19, %c0_20] : memref<2x4xf32, #tpu.memory_space<smem>>
    %27 = vector.broadcast %26 : f32 to vector<2x128xf32>
    %28 = arith.mulf %27, %1 : vector<2x128xf32>
    %c1_21 = arith.constant 1 : index
    %c1_22 = arith.constant 1 : index
    %29 = memref.load %arg1[%c1_21, %c1_22] : memref<2x4xf32, #tpu.memory_space<smem>>
    %30 = vector.broadcast %29 : f32 to vector<2x128xf32>
    %31 = arith.mulf %30, %3 : vector<2x128xf32>
    %32 = arith.addf %28, %31 : vector<2x128xf32>
    %c1_23 = arith.constant 1 : index
    %c2_24 = arith.constant 2 : index
    %33 = memref.load %arg1[%c1_23, %c2_24] : memref<2x4xf32, #tpu.memory_space<smem>>
    %34 = vector.broadcast %33 : f32 to vector<2x128xf32>
    %35 = arith.mulf %34, %5 : vector<2x128xf32>
    %36 = arith.addf %32, %35 : vector<2x128xf32>
    %c1_25 = arith.constant 1 : index
    %c3_26 = arith.constant 3 : index
    %37 = memref.load %arg1[%c1_25, %c3_26] : memref<2x4xf32, #tpu.memory_space<smem>>
    %38 = vector.broadcast %37 : f32 to vector<2x128xf32>
    %39 = arith.mulf %38, %7 : vector<2x128xf32>
    %40 = arith.addf %36, %39 : vector<2x128xf32>
    %c1_27 = arith.constant 1 : index
    %c0_28 = arith.constant 0 : index
    %c0_29 = arith.constant 0 : index
    %41 = vector.load %arg3[%c1_27, %c0_28, %c0_29] : memref<2x2x128xf32, #tpu.memory_space<vmem>>, vector<1x2x128xf32>
    %42 = vector.shape_cast %41 : vector<1x2x128xf32> to vector<2x128xf32>
    %43 = vector.shape_cast %40 : vector<2x128xf32> to vector<1x2x128xf32>
    tpu.vector_store %arg3[%c1_27, %c0_28, %c0_29], %43 {strides = array<i32>} : memref<2x2x128xf32, #tpu.memory_space<vmem>>, vector<1x2x128xf32>,
    return
  }
  func.func @transform_0(%arg0: i32) -> (i32, i32) {
    %c0_i32 = arith.constant 0 : i32
    %c0_i32_0 = arith.constant 0 : i32
    %c0_i32_1 = arith.constant 0 : i32
    return %c0_i32, %c0_i32_0 : i32, i32
  }
  func.func @transform_1(%arg0: i32) -> (i32, i32, i32) {
    %c0_i32 = arith.constant 0 : i32
    %c0_i32_0 = arith.constant 0 : i32
    %c0_i32_1 = arith.constant 0 : i32
    return %c0_i32, %arg0, %c0_i32_0 : i32, i32, i32
  }
  func.func @transform_2(%arg0: i32) -> (i32, i32, i32) {
    %c0_i32 = arith.constant 0 : i32
    %c0_i32_0 = arith.constant 0 : i32
    %c0_i32_1 = arith.constant 0 : i32
    return %c0_i32, %arg0, %c0_i32_0 : i32, i32, i32
  }
}

</mosaic_0001>

<llo_original>
// kernel: tpu_custom_call.1
$region0: #{tpu_custom_call.1}
  #allocation0 [shape = 'u32[]', space=smem, size = 0x4, offset = 0x4, fixed_abs, tag = 'smem constant byte address 0x4 - core index']
  #allocation1 [shape = 'u32[144,128]{1,0:T(1,128)}', space=vmem, size = 0x12000, scoped, tag = 'internal scratch']
  %s0 = inlined_call_operand.hbm [shape: f32[2,4], index: 0, kind: input, shape index: {}]
  %s1 = inlined_call_operand.hbm [shape: f32[4,2,128], index: 1, kind: input, shape index: {}]
  %s2 = inlined_call_operand.hbm [shape: f32[2,2,128], index: 2, kind: output, shape index: {}]
  %s3 = sld [smem:[#allocation0]]
  $region26: #{tpu_custom_call.1} parent=0
    _
  %s5 = ssub.s32 1, %s3
  %s6 = scalar_select 0, %s5, %s3
  $region1: #{tpu_custom_call.1} parent=0
    #allocation2 [shape = 'u8[1024]{0}', space=smem, size = 0x400, scoped, tag = 'input window, operand 0, single buffered']
    #allocation3 [shape = 's32[1]{0}', space=sflag, size = 0x4, scoped, tag = 'scoped memory for tpu_custom_call.1']
    #allocation4 [shape = 's32[1]{0}', space=sflag, size = 0x4, scoped, tag = 'scoped memory for tpu_custom_call.1']
    #allocation5 [shape = 's32[1]{0}', space=sflag, size = 0x4, scoped, tag = 'scoped memory for tpu_custom_call.1']
    #allocation6 [shape = 'u8[4096]{0}', space=vmem, size = 0x1000, scoped, tag = 'input window, operand 1, single buffered']
    #allocation7 [shape = 'u8[2048]{0}', space=vmem, size = 0x800, scoped, tag = 'output window, operand 0, single buffered']
    %7 = vsyncpa [#allocation5], 0
    %8 = vsyncpa [#allocation3], 0
    %9 = vsyncpa [#allocation4], 0
    // Predicated region
    $region2: #{tpu_custom_call.1} parent=1 // pred_check
      _
    $region3: #{tpu_custom_call.1} parent=1 // pred_check_branch
      %11 = sbr.rel (0) target = $region5
    $region4: #{tpu_custom_call.1} parent=1 // pred_region
      %s13 = ssub.s32 32, 32
      %14 = vsyncadd [#allocation5], %s13
      %17 = dma.hbm_to_smem %s0, 32, [#allocation2], [#allocation5]
    $region5: #{tpu_custom_call.1} parent=1 // pred_fallthru
      _
    // Predicated region
    $region6: #{tpu_custom_call.1} parent=1 // pred_check
      _
    $region7: #{tpu_custom_call.1} parent=1 // pred_check_branch
      %19 = sbr.rel (0) target = $region9
    $region8: #{tpu_custom_call.1} parent=1 // pred_region
      %s21 = ssub.s32 128, 128
      %22 = vsyncadd [#allocation3], %s21
      %s23 = sshll.u32 [#allocation6], 4
      %s24 = int_to_ptr.vmem [resolvable:$true] %s23
      %29 = dma.hbm_to_vmem [thread:$0]  %s1, 128, %s24, [#allocation3], 32, 32, 2
    $region9: #{tpu_custom_call.1} parent=1 // pred_fallthru
      _
    // Predicated region
    $region10: #{tpu_custom_call.1} parent=1 // pred_check
      _
    $region11: #{tpu_custom_call.1} parent=1 // pred_check_branch
      %31 = sbr.rel (0) target = $region13
    $region12: #{tpu_custom_call.1} parent=1 // pred_region
      %32 = dma.done [#allocation5], 32
    $region13: #{tpu_custom_call.1} parent=1 // pred_fallthru
      _
    // Predicated region
    $region14: #{tpu_custom_call.1} parent=1 // pred_check
      _
    $region15: #{tpu_custom_call.1} parent=1 // pred_check_branch
      %34 = sbr.rel (0) target = $region17
    $region16: #{tpu_custom_call.1} parent=1 // pred_region
      %35 = dma.done [#allocation3], 128
    $region17: #{tpu_custom_call.1} parent=1 // pred_fallthru
      _
    %36 = sfence
    %v37 = vld [vmem:[#allocation6] sm:$0x3]
    %s38 = scalar_lea.vmem [#allocation6], 2
    %v39 = vld [vmem:[%s38] sm:$0x3]
    %s40 = scalar_lea.vmem [#allocation6], 4
    %v41 = vld [vmem:[%s40] sm:$0x3]
    %s42 = scalar_lea.vmem [#allocation6], 6
    %v43 = vld [vmem:[%s42] sm:$0x3]
    %s44 = sld [smem:[#allocation2]]
    %v45 = vstv %s44
    %v46 = vmul.f32 %v45, %v37
    %s47 = sld [smem:[#allocation2 + $0x1]]
    %v48 = vstv %s47
    %v49 = vmul.f32 %v48, %v39
    %v50 = vadd.f32 %v46, %v49
    %s51 = sld [smem:[#allocation2 + $0x2]]
    %v52 = vstv %s51
    %v53 = vmul.f32 %v52, %v41
    %v54 = vadd.f32 %v50, %v53
    %s55 = sld [smem:[#allocation2 + $0x3]]
    %v56 = vstv %s55
    %v57 = vmul.f32 %v56, %v43
    %v58 = vadd.f32 %v54, %v57
    %59 = vst [vmem:[#allocation7] sm:$0x3] %v58
    %s60 = sld [smem:[#allocation2 + $0x80]]
    %v61 = vstv %s60
    %v62 = vmul.f32 %v61, %v37
    %s63 = sld [smem:[#allocation2 + $0x81]]
    %v64 = vstv %s63
    %v65 = vmul.f32 %v64, %v39
    %v66 = vadd.f32 %v62, %v65
    %s67 = sld [smem:[#allocation2 + $0x82]]
    %v68 = vstv %s67
    %v69 = vmul.f32 %v68, %v41
    %v70 = vadd.f32 %v66, %v69
    %s71 = sld [smem:[#allocation2 + $0x83]]
    %v72 = vstv %s71
    %v73 = vmul.f32 %v72, %v43
    %v74 = vadd.f32 %v70, %v73
    %s75 = scalar_lea.vmem [#allocation7], 2
    %76 = vst [vmem:[%s75] sm:$0x3] %v74
    // Predicated region
    $region18: #{tpu_custom_call.1} parent=1 // pred_check
      _
    $region19: #{tpu_custom_call.1} parent=1 // pred_check_branch
      %78 = sbr.rel (0) target = $region21
    $region20: #{tpu_custom_call.1} parent=1 // pred_region
      %s80 = ssub.s32 64, 64
      %81 = vsyncadd [#allocation4], %s80
      %s82 = sshll.u32 [#allocation7], 4
      %s83 = int_to_ptr.vmem [resolvable:$true] %s82
      %88 = dma.vmem_to_hbm [thread:$0]  %s83, 64, %s2, [#allocation4], 32, 32, 2
    $region21: #{tpu_custom_call.1} parent=1 // pred_fallthru
      _
    // Predicated region
    $region22: #{tpu_custom_call.1} parent=1 // pred_check
      _
    $region23: #{tpu_custom_call.1} parent=1 // pred_check_branch
      %90 = sbr.rel (0) target = $region25
    $region24: #{tpu_custom_call.1} parent=1 // pred_region
      %91 = dma.done [#allocation4], 64
    $region25: #{tpu_custom_call.1} parent=1 // pred_fallthru
      _
    %92 = vsyncpa [#allocation3], 1
    %93 = vsyncpa [#allocation4], 1
    %94 = vsyncpa [#allocation5], 1

</llo_original>
